<compile_context>
chip_gen: v6e
topology: v6e:2x2x1
jax: 0.10.0
libtpu: 0.0.40
codegen_flags: <defaults>
</compile_context>

<pallas_src>
import jax
import jax.numpy as jnp
from jax.experimental import pallas as pl
from jax.experimental.pallas import tpu as pltpu


_IN_DIM = 400        # fixed by the module: nn.Linear(400, H)
_NUM_CLASSES = 4
_CLS_PAD = 128       # lane-dense classifier output width (pad 4 -> 128, slice in wrapper)
_LANE = 128          # vreg lane width
_SUBLANE = 16        # bf16 sublane tile; batch tiles kept multiples of this
_MIN_SPLIT_ROWS = 128  # only split a single-tile grid in two if each half has >= this many rows


def _round_up(v, m):
    return ((v + m - 1) // m) * m


def _autoencoder_kernel(x_ref, we_ref, be_ref, wc_ref, bc_ref, cls_ref):
    # ---- encoder: Linear(400, Hp) + Sigmoid.  bf16 MXU operands, f32 accumulation.
    x_bf16 = x_ref[...].astype(jnp.bfloat16)                            # (TB, 400)
    z_enc = (jnp.dot(x_bf16, we_ref[...], preferred_element_type=jnp.float32)
             + be_ref[...])                                             # (TB, Hp) f32
    encoded = 1.0 / (1.0 + jnp.exp(-z_enc))                             # exact sigmoid, f32

    # ---- decoder intentionally omitted: forward() discards `decoded` (dead compute + dead DMA).

    # ---- classifier: Linear(Hp, 128-padded).  Zero-padded W_cls ROWS cancel the sigmoid(0)=0.5
    #      values on padded hidden lanes, so logits match the unpadded computation exactly.
    logits = (jnp.dot(encoded.astype(jnp.bfloat16), wc_ref[...],
                      preferred_element_type=jnp.float32)
              + bc_ref[...])                                            # (TB, 128) f32
    cls_ref[...] = logits.astype(cls_ref.dtype)                         # bf16 lane-dense store


def autoencoder_forward(x, w_enc, b_enc, w_dec, b_dec, w_cls, b_cls, *, block_b=512):
    """Forward pass of `Autoencoder`; returns the classifier logits (the module's only output).

    Accepts the full parameter set of the module; decoder params are unused because forward()
    discards the decoded output (dead work is deliberately not computed).
    """
    del w_dec, b_dec

    B, in_dim = x.shape
    H = w_enc.shape[1]
    num_classes = w_cls.shape[1]
    Hp = _round_up(H, _LANE)               # full-lane-occupancy hidden width

    # --- one-time wrapper-side parameter prep (layout plumbing, not per-step work) -----------
    w_enc_p = jnp.zeros((in_dim, Hp), jnp.bfloat16).at[:, :H].set(w_enc.astype(jnp.bfloat16))
    b_enc_p = jnp.zeros((1, Hp), jnp.float32).at[:, :H].set(
        b_enc.reshape(1, H).astype(jnp.float32))
    # NB: W_cls rows beyond H MUST stay zero (cancels sigmoid(0)=0.5 on padded hidden lanes).
    w_cls_p = jnp.zeros((Hp, _CLS_PAD), jnp.bfloat16).at[:H, :num_classes].set(
        w_cls.astype(jnp.bfloat16))
    b_cls_p = jnp.zeros((1, _CLS_PAD), jnp.float32).at[:, :num_classes].set(
        b_cls.reshape(1, num_classes).astype(jnp.float32))

    # --- batch tiling -------------------------------------------------------------------------
    tb = min(block_b, _round_up(B, _SUBLANE))
    # v7x has two TensorCores: when the batch is big enough, prefer >= 2 grid steps so the
    # "parallel" axis can actually be sharded (two tb/2 tiles beat one tb tile on v7x; the
    # extra ~0.35 us step is negligible on single-TC v5e/v6e at these tile sizes).
    if pl.cdiv(B, tb) < 2 and B >= 2 * _MIN_SPLIT_ROWS:
        tb = _round_up(pl.cdiv(B, 2), _SUBLANE)
    pad_b = (-B) % tb
    bp = B + pad_b
    grid = (bp // tb,)

    # Advisory cost estimate on the REAL (unpadded) work so XLA overlaps this small call.
    flops = 2 * B * (in_dim * H + H * num_classes)
    transcendentals = B * H                                  # exp in the sigmoid
    bytes_accessed = (B * in_dim * 4                         # x read (f32)
                      + in_dim * H * 2 + H * 4               # encoder weight (bf16) + bias (f32)
                      + H * num_classes * 2 + num_classes * 4
                      + B * num_classes * 2)                 # bf16 logits writeback

    out_shape = jax.ShapeDtypeStruct((bp, _CLS_PAD), jnp.bfloat16)

    def build(single_buffer_weights):
        def resident(shape):
            kwargs = {}
            if single_buffer_weights:
                # Constant-index blocks are fetched once; one buffer suffices -> frees VMEM for
                # bigger batch tiles (matters for large H and on v7x's 64 MiB VMEM).
                kwargs["pipeline_mode"] = pl.Buffered(1)
            return pl.BlockSpec(shape, lambda i: (0, 0), **kwargs)

        return pl.pallas_call(
            _autoencoder_kernel,
            out_shape=out_shape,
            grid=grid,
            in_specs=[
                pl.BlockSpec((tb, in_dim), lambda i: (i, 0)),   # x: tiled over the batch
                resident((in_dim, Hp)),                         # W_enc (lane-padded), resident
                resident((1, Hp)),                              # b_enc, resident
                resident((Hp, _CLS_PAD)),                       # W_cls (row+lane padded), resident
                resident((1, _CLS_PAD)),                        # b_cls, resident
            ],
            out_specs=pl.BlockSpec((tb, _CLS_PAD), lambda i: (i, 0)),
            compiler_params=pltpu.CompilerParams(
                dimension_semantics=("parallel",),   # batch axis: megacore / v7x dual-core
                vmem_limit_bytes=32 * 1024 * 1024,   # explicit budget (v5e scoped default is 16 MiB)
            ),
            cost_estimate=pl.CostEstimate(
                flops=flops,
                transcendentals=transcendentals,
                bytes_accessed=bytes_accessed),
        )

    x_p = jnp.pad(x, ((0, pad_b), (0, 0))) if pad_b else x
    args = (x_p, w_enc_p, b_enc_p, w_cls_p, b_cls_p)
    try:
        logits_padded = build(True)(*args)
    except Exception:
        # Fallback: default double-buffered weights if this jax build rejects pl.Buffered(1).
        logits_padded = build(False)(*args)

    return logits_padded[:B, :num_classes].astype(jnp.float32)


def init_params(key, num_hidden_nodes, in_dim=_IN_DIM, num_classes=_NUM_CLASSES):
    """Deterministic parameter init mimicking nn.Linear's U(-1/sqrt(fan_in), 1/sqrt(fan_in)).

    Weights are stored (in_features, out_features), i.e. the transpose of PyTorch's layout,
    so the kernel does plain `x @ W + b`.
    """
    ks = jax.random.split(key, 6)

    def uniform(k, shape, fan_in):
        bound = 1.0 / jnp.sqrt(jnp.float32(fan_in))
        return jax.random.uniform(k, shape, jnp.float32, -bound, bound)

    H = num_hidden_nodes
    w_enc = uniform(ks[0], (in_dim, H), in_dim)
    b_enc = uniform(ks[1], (1, H), in_dim)
    w_dec = uniform(ks[2], (H, in_dim), H)       # present in the module, unused by forward()
    b_dec = uniform(ks[3], (1, in_dim), H)
    w_cls = uniform(ks[4], (H, num_classes), H)
    b_cls = uniform(ks[5], (1, num_classes), H)
    return w_enc, b_enc, w_dec, b_dec, w_cls, b_cls


def reference_forward(x, w_enc, b_enc, w_dec, b_dec, w_cls, b_cls):
    """Pure-JAX reference matching the kernel's precision choices (bf16 operands, f32 acc)."""
    z = (jnp.dot(x.astype(jnp.bfloat16), w_enc.astype(jnp.bfloat16),
                 preferred_element_type=jnp.float32) + b_enc.reshape(1, -1))
    encoded = jax.nn.sigmoid(z)
    _decoded = jnp.tanh(encoded @ w_dec + b_dec.reshape(1, -1))   # computed & discarded, as in forward()
    return (jnp.dot(encoded.astype(jnp.bfloat16), w_cls.astype(jnp.bfloat16),
                    preferred_element_type=jnp.float32) + b_cls.reshape(1, -1))


if __name__ == "__main__":
    key = jax.random.PRNGKey(0)
    k_x, k_p = jax.random.split(key)

    B, H = 8, 32                        # small shapes: batch=8, num_hidden_nodes=32
    x = jax.random.normal(k_x, (B, _IN_DIM), jnp.float32)
    params = init_params(k_p, H)

    logits = jax.block_until_ready(autoencoder_forward(x, *params))
    ref = jax.block_until_ready(reference_forward(x, *params))
    assert logits.shape == (B, _NUM_CLASSES)
    max_err = float(jnp.max(jnp.abs(logits - ref)))
    # Tolerance covers bf16 matmul operands + the bf16 logit writeback.
    assert jnp.allclose(logits, ref, atol=2e-2, rtol=2e-2), f"mismatch vs reference: {max_err}"

    # Second check: multi-step grid (tb < B) with batch padding exercised.
    B2 = 40
    x2 = jax.random.normal(jax.random.PRNGKey(1), (B2, _IN_DIM), jnp.float32)
    logits2 = jax.block_until_ready(autoencoder_forward(x2, *params, block_b=16))
    ref2 = reference_forward(x2, *params)
    assert logits2.shape == (B2, _NUM_CLASSES)
    assert jnp.allclose(logits2, ref2, atol=2e-2, rtol=2e-2)

    print("KERNEL_OK")
</pallas_src>

<mosaic_0001>
module attributes {stable_mosaic.version = 11 : i64} {
  func.func @_autoencoder_kernel(%arg0: i32, %arg1: memref<16x400xf32, #tpu.memory_space<vmem>>, %arg2: memref<400x128xbf16, #tpu.memory_space<vmem>>, %arg3: memref<1x128xf32, #tpu.memory_space<vmem>>, %arg4: memref<128x128xbf16, #tpu.memory_space<vmem>>, %arg5: memref<1x128xf32, #tpu.memory_space<vmem>>, %arg6: memref<16x128xbf16, #tpu.memory_space<vmem>>) attributes {dimension_semantics = [#tpu.dimension_semantics<parallel>], iteration_bounds = array<i64: 1>, scalar_prefetch = 0 : i64, scratch_operands = 0 : i64, tpu.core_type = #tpu.core_type<tc>, window_params = [{transform_indices = @transform_0, window_bounds = array<i64: 16, 400>}, {pipeline_mode = #tpu.pipeline_mode<synchronous>, transform_indices = @transform_1, window_bounds = array<i64: 400, 128>}, {pipeline_mode = #tpu.pipeline_mode<synchronous>, transform_indices = @transform_2, window_bounds = array<i64: 1, 128>}, {pipeline_mode = #tpu.pipeline_mode<synchronous>, transform_indices = @transform_3, window_bounds = array<i64: 128, 128>}, {pipeline_mode = #tpu.pipeline_mode<synchronous>, transform_indices = @transform_4, window_bounds = array<i64: 1, 128>}, {transform_indices = @transform_5, window_bounds = array<i64: 16, 128>}]} {
    %c0 = arith.constant 0 : index
    %c0_0 = arith.constant 0 : index
    %0 = vector.load %arg1[%c0, %c0_0] : memref<16x400xf32, #tpu.memory_space<vmem>>, vector<16x400xf32>
    %1 = arith.truncf %0 : vector<16x400xf32> to vector<16x400xbf16>
    %c0_1 = arith.constant 0 : index
    %c0_2 = arith.constant 0 : index
    %2 = vector.load %arg2[%c0_1, %c0_2] : memref<400x128xbf16, #tpu.memory_space<vmem>>, vector<400x128xbf16>
    %cst = arith.constant dense<0.000000e+00> : vector<16x128xf32>
    %3 = tpu.matmul %1, %2, %cst {dimension_numbers = #tpu.dot_dimension_numbers<[1], [0], [0], [1], [0, 0, 1, 1], [], []>} : vector<16x400xbf16>, vector<400x128xbf16>, vector<16x128xf32> -> vector<16x128xf32>
    %c0_3 = arith.constant 0 : index
    %c0_4 = arith.constant 0 : index
    %4 = vector.load %arg3[%c0_3, %c0_4] : memref<1x128xf32, #tpu.memory_space<vmem>>, vector<1x128xf32>
    %5 = vector.broadcast %4 : vector<1x128xf32> to vector<16x128xf32>
    %6 = arith.addf %3, %5 : vector<16x128xf32>
    %cst_5 = arith.constant 0.000000e+00 : f32
    %7 = vector.broadcast %cst_5 : f32 to vector<16x128xf32>
    %8 = arith.subf %7, %6 : vector<16x128xf32>
    %9 = math.exp %8 : vector<16x128xf32>
    %cst_6 = arith.constant 1.000000e+00 : f32
    %10 = vector.broadcast %cst_6 : f32 to vector<16x128xf32>
    %11 = arith.addf %10, %9 : vector<16x128xf32>
    %cst_7 = arith.constant 1.000000e+00 : f32
    %12 = vector.broadcast %cst_7 : f32 to vector<16x128xf32>
    %13 = arith.divf %12, %11 : vector<16x128xf32>
    %14 = arith.truncf %13 : vector<16x128xf32> to vector<16x128xbf16>
    %c0_8 = arith.constant 0 : index
    %c0_9 = arith.constant 0 : index
    %15 = vector.load %arg4[%c0_8, %c0_9] : memref<128x128xbf16, #tpu.memory_space<vmem>>, vector<128x128xbf16>
    %cst_10 = arith.constant dense<0.000000e+00> : vector<16x128xf32>
    %16 = tpu.matmul %14, %15, %cst_10 {dimension_numbers = #tpu.dot_dimension_numbers<[1], [0], [0], [1], [0, 0, 1, 1], [], []>} : vector<16x128xbf16>, vector<128x128xbf16>, vector<16x128xf32> -> vector<16x128xf32>
    %c0_11 = arith.constant 0 : index
    %c0_12 = arith.constant 0 : index
    %17 = vector.load %arg5[%c0_11, %c0_12] : memref<1x128xf32, #tpu.memory_space<vmem>>, vector<1x128xf32>
    %18 = vector.broadcast %17 : vector<1x128xf32> to vector<16x128xf32>
    %19 = arith.addf %16, %18 : vector<16x128xf32>
    %20 = arith.truncf %19 : vector<16x128xf32> to vector<16x128xbf16>
    %c0_13 = arith.constant 0 : index
    %c0_14 = arith.constant 0 : index
    %21 = vector.load %arg6[%c0_13, %c0_14] : memref<16x128xbf16, #tpu.memory_space<vmem>>, vector<16x128xbf16>
    tpu.vector_store %arg6[%c0_13, %c0_14], %20 {strides = array<i32>} : memref<16x128xbf16, #tpu.memory_space<vmem>>, vector<16x128xbf16>,
    return
  }
  func.func @transform_0(%arg0: i32) -> (i32, i32) {
    %c0_i32 = arith.constant 0 : i32
    %c0_i32_0 = arith.constant 0 : i32
    return %arg0, %c0_i32 : i32, i32
  }
  func.func @transform_1(%arg0: i32) -> (i32, i32) {
    %c0_i32 = arith.constant 0 : i32
    %c0_i32_0 = arith.constant 0 : i32
    %c0_i32_1 = arith.constant 0 : i32
    return %c0_i32, %c0_i32_0 : i32, i32
  }
  func.func @transform_2(%arg0: i32) -> (i32, i32) {
    %c0_i32 = arith.constant 0 : i32
    %c0_i32_0 = arith.constant 0 : i32
    %c0_i32_1 = arith.constant 0 : i32
    return %c0_i32, %c0_i32_0 : i32, i32
  }
  func.func @transform_3(%arg0: i32) -> (i32, i32) {
    %c0_i32 = arith.constant 0 : i32
    %c0_i32_0 = arith.constant 0 : i32
    %c0_i32_1 = arith.constant 0 : i32
    return %c0_i32, %c0_i32_0 : i32, i32
  }
  func.func @transform_4(%arg0: i32) -> (i32, i32) {
    %c0_i32 = arith.constant 0 : i32
    %c0_i32_0 = arith.constant 0 : i32
    %c0_i32_1 = arith.constant 0 : i32
    return %c0_i32, %c0_i32_0 : i32, i32
  }
  func.func @transform_5(%arg0: i32) -> (i32, i32) {
    %c0_i32 = arith.constant 0 : i32
    %c0_i32_0 = arith.constant 0 : i32
    return %arg0, %c0_i32 : i32, i32
  }
}

module attributes {stable_mosaic.version = 11 : i64} {
  func.func @_autoencoder_kernel(%arg0: i32, %arg1: memref<16x400xf32, #tpu.memory_space<vmem>>, %arg2: memref<400x128xbf16, #tpu.memory_space<vmem>>, %arg3: memref<1x128xf32, #tpu.memory_space<vmem>>, %arg4: memref<128x128xbf16, #tpu.memory_space<vmem>>, %arg5: memref<1x128xf32, #tpu.memory_space<vmem>>, %arg6: memref<16x128xbf16, #tpu.memory_space<vmem>>) attributes {dimension_semantics = [#tpu.dimension_semantics<parallel>], iteration_bounds = array<i64: 1>, scalar_prefetch = 0 : i64, scratch_operands = 0 : i64, tpu.core_type = #tpu.core_type<tc>, window_params = [{transform_indices = @transform_0, window_bounds = array<i64: 16, 400>}, {pipeline_mode = #tpu.pipeline_mode<synchronous>, transform_indices = @transform_1, window_bounds = array<i64: 400, 128>}, {pipeline_mode = #tpu.pipeline_mode<synchronous>, transform_indices = @transform_2, window_bounds = array<i64: 1, 128>}, {pipeline_mode = #tpu.pipeline_mode<synchronous>, transform_indices = @transform_3, window_bounds = array<i64: 128, 128>}, {pipeline_mode = #tpu.pipeline_mode<synchronous>, transform_indices = @transform_4, window_bounds = array<i64: 1, 128>}, {transform_indices = @transform_5, window_bounds = array<i64: 16, 128>}]} {
    %c0 = arith.constant 0 : index
    %c0_0 = arith.constant 0 : index
    %0 = vector.load %arg1[%c0, %c0_0] : memref<16x400xf32, #tpu.memory_space<vmem>>, vector<16x400xf32>
    %1 = arith.truncf %0 : vector<16x400xf32> to vector<16x400xbf16>
    %c0_1 = arith.constant 0 : index
    %c0_2 = arith.constant 0 : index
    %2 = vector.load %arg2[%c0_1, %c0_2] : memref<400x128xbf16, #tpu.memory_space<vmem>>, vector<400x128xbf16>
    %cst = arith.constant dense<0.000000e+00> : vector<16x128xf32>
    %3 = tpu.matmul %1, %2, %cst {dimension_numbers = #tpu.dot_dimension_numbers<[1], [0], [0], [1], [0, 0, 1, 1], [], []>} : vector<16x400xbf16>, vector<400x128xbf16>, vector<16x128xf32> -> vector<16x128xf32>
    %c0_3 = arith.constant 0 : index
    %c0_4 = arith.constant 0 : index
    %4 = vector.load %arg3[%c0_3, %c0_4] : memref<1x128xf32, #tpu.memory_space<vmem>>, vector<1x128xf32>
    %5 = vector.broadcast %4 : vector<1x128xf32> to vector<16x128xf32>
    %6 = arith.addf %3, %5 : vector<16x128xf32>
    %cst_5 = arith.constant 0.000000e+00 : f32
    %7 = vector.broadcast %cst_5 : f32 to vector<16x128xf32>
    %8 = arith.subf %7, %6 : vector<16x128xf32>
    %9 = math.exp %8 : vector<16x128xf32>
    %cst_6 = arith.constant 1.000000e+00 : f32
    %10 = vector.broadcast %cst_6 : f32 to vector<16x128xf32>
    %11 = arith.addf %10, %9 : vector<16x128xf32>
    %cst_7 = arith.constant 1.000000e+00 : f32
    %12 = vector.broadcast %cst_7 : f32 to vector<16x128xf32>
    %13 = arith.divf %12, %11 : vector<16x128xf32>
    %14 = arith.truncf %13 : vector<16x128xf32> to vector<16x128xbf16>
    %c0_8 = arith.constant 0 : index
    %c0_9 = arith.constant 0 : index
    %15 = vector.load %arg4[%c0_8, %c0_9] : memref<128x128xbf16, #tpu.memory_space<vmem>>, vector<128x128xbf16>
    %cst_10 = arith.constant dense<0.000000e+00> : vector<16x128xf32>
    %16 = tpu.matmul %14, %15, %cst_10 {dimension_numbers = #tpu.dot_dimension_numbers<[1], [0], [0], [1], [0, 0, 1, 1], [], []>} : vector<16x128xbf16>, vector<128x128xbf16>, vector<16x128xf32> -> vector<16x128xf32>
    %c0_11 = arith.constant 0 : index
    %c0_12 = arith.constant 0 : index
    %17 = vector.load %arg5[%c0_11, %c0_12] : memref<1x128xf32, #tpu.memory_space<vmem>>, vector<1x128xf32>
    %18 = vector.broadcast %17 : vector<1x128xf32> to vector<16x128xf32>
    %19 = arith.addf %16, %18 : vector<16x128xf32>
    %20 = arith.truncf %19 : vector<16x128xf32> to vector<16x128xbf16>
    %c0_13 = arith.constant 0 : index
    %c0_14 = arith.constant 0 : index
    %21 = vector.load %arg6[%c0_13, %c0_14] : memref<16x128xbf16, #tpu.memory_space<vmem>>, vector<16x128xbf16>
    tpu.vector_store %arg6[%c0_13, %c0_14], %20 {strides = array<i32>} : memref<16x128xbf16, #tpu.memory_space<vmem>>, vector<16x128xbf16>,
    return
  }
  func.func @transform_0(%arg0: i32) -> (i32, i32) {
    %c0_i32 = arith.constant 0 : i32
    %c0_i32_0 = arith.constant 0 : i32
    return %arg0, %c0_i32 : i32, i32
  }
  func.func @transform_1(%arg0: i32) -> (i32, i32) {
    %c0_i32 = arith.constant 0 : i32
    %c0_i32_0 = arith.constant 0 : i32
    %c0_i32_1 = arith.constant 0 : i32
    return %c0_i32, %c0_i32_0 : i32, i32
  }
  func.func @transform_2(%arg0: i32) -> (i32, i32) {
    %c0_i32 = arith.constant 0 : i32
    %c0_i32_0 = arith.constant 0 : i32
    %c0_i32_1 = arith.constant 0 : i32
    return %c0_i32, %c0_i32_0 : i32, i32
  }
  func.func @transform_3(%arg0: i32) -> (i32, i32) {
    %c0_i32 = arith.constant 0 : i32
    %c0_i32_0 = arith.constant 0 : i32
    %c0_i32_1 = arith.constant 0 : i32
    return %c0_i32, %c0_i32_0 : i32, i32
  }
  func.func @transform_4(%arg0: i32) -> (i32, i32) {
    %c0_i32 = arith.constant 0 : i32
    %c0_i32_0 = arith.constant 0 : i32
    %c0_i32_1 = arith.constant 0 : i32
    return %c0_i32, %c0_i32_0 : i32, i32
  }
  func.func @transform_5(%arg0: i32) -> (i32, i32) {
    %c0_i32 = arith.constant 0 : i32
    %c0_i32_0 = arith.constant 0 : i32
    return %arg0, %c0_i32 : i32, i32
  }
}

</mosaic_0001>

<llo_original>
// kernel: tpu_custom_call.1
$region0: #{tpu_custom_call.1}
  #allocation0 [shape = 'u32[]', space=smem, size = 0x4, offset = 0x4, fixed_abs, tag = 'smem constant byte address 0x4 - core index']
  #allocation1 [shape = 'u32[144,128]{1,0:T(1,128)}', space=vmem, size = 0x12000, scoped, tag = 'internal scratch']
  %s0 = inlined_call_operand.hbm [shape: f32[16,400], index: 0, kind: input, shape index: {}]
  %s1 = inlined_call_operand.hbm [shape: bf16[400,128], index: 1, kind: input, shape index: {}]
  %s2 = inlined_call_operand.vmem [shape: f32[1,128], index: 2, kind: input, shape index: {}]
  %s3 = inlined_call_operand.hbm [shape: bf16[128,128], index: 3, kind: input, shape index: {}]
  %s4 = inlined_call_operand.vmem [shape: f32[1,128], index: 4, kind: input, shape index: {}]
  %s5 = inlined_call_operand.hbm [shape: bf16[16,128], index: 5, kind: output, shape index: {}]
  %s6 = sld [smem:[#allocation0]]
  $region42: #{tpu_custom_call.1} parent=0
    _
  %s8 = ssub.s32 1, %s6
  %s9 = scalar_select 0, %s8, %s6
  $region1: #{tpu_custom_call.1} parent=0
    #allocation2 [shape = 'u8[32768]{0}', space=vmem, size = 0x8000, scoped, tag = 'input window, operand 0, single buffered']
    #allocation3 [shape = 's32[1]{0}', space=sflag, size = 0x4, scoped, tag = 'scoped memory for tpu_custom_call.1']
    #allocation4 [shape = 's32[1]{0}', space=sflag, size = 0x4, scoped, tag = 'scoped memory for tpu_custom_call.1']
    #allocation5 [shape = 'u8[102400]{0}', space=vmem, size = 0x19000, scoped, tag = 'input window, operand 1, single buffered']
    #allocation6 [shape = 's32[1]{0}', space=sflag, size = 0x4, scoped, tag = 'scoped memory for tpu_custom_call.1']
    #allocation7 [shape = 'u8[32768]{0}', space=vmem, size = 0x8000, scoped, tag = 'input window, operand 3, single buffered']
    #allocation8 [shape = 'u8[4096]{0}', space=vmem, size = 0x1000, scoped, tag = 'output window, operand 0, single buffered']
    %10 = vsyncpa [#allocation3], 0
    %11 = vsyncpa [#allocation6], 0
    %12 = vsyncpa [#allocation4], 0
    // Predicated region
    $region2: #{tpu_custom_call.1} parent=1 // pred_check
      _
    $region3: #{tpu_custom_call.1} parent=1 // pred_check_branch
      %14 = sbr.rel (0) target = $region5
    $region4: #{tpu_custom_call.1} parent=1 // pred_region
      %s16 = ssub.s32 1024, 1024
      %17 = vsyncadd [#allocation3], %s16
      %s18 = sshll.u32 [#allocation2], 4
      %s19 = int_to_ptr.vmem [resolvable:$true] %s18
      %24 = dma.hbm_to_vmem [thread:$0]  %s0, 1024, %s19, [#allocation3], 512, 512, 32
    $region5: #{tpu_custom_call.1} parent=1 // pred_fallthru
      _
    // Predicated region
    $region6: #{tpu_custom_call.1} parent=1 // pred_check
      _
    $region7: #{tpu_custom_call.1} parent=1 // pred_check_branch
      %26 = sbr.rel (0) target = $region9
    $region8: #{tpu_custom_call.1} parent=1 // pred_region
      %s28 = ssub.s32 3200, 3200
      %29 = vsyncadd [#allocation6], %s28
      %s30 = sshll.u32 [#allocation5], 4
      %s31 = int_to_ptr.vmem [resolvable:$true] %s30
      %36 = dma.hbm_to_vmem [thread:$0]  %s1, 3200, %s31, [#allocation6], 64, 64, 4
    $region9: #{tpu_custom_call.1} parent=1 // pred_fallthru
      _
    // Predicated region
    $region10: #{tpu_custom_call.1} parent=1 // pred_check
      _
    $region11: #{tpu_custom_call.1} parent=1 // pred_check_branch
      %38 = sbr.rel (0) target = $region13
    $region12: #{tpu_custom_call.1} parent=1 // pred_region
      _
    $region13: #{tpu_custom_call.1} parent=1 // pred_fallthru
      _
    // Predicated region
    $region14: #{tpu_custom_call.1} parent=1 // pred_check
      _
    $region15: #{tpu_custom_call.1} parent=1 // pred_check_branch
      %40 = sbr.rel (0) target = $region17
    $region16: #{tpu_custom_call.1} parent=1 // pred_region
      %s42 = ssub.s32 1024, 1024
      %43 = vsyncadd [#allocation6], %s42
      %s44 = sshll.u32 [#allocation7], 4
      %s45 = int_to_ptr.vmem [resolvable:$true] %s44
      %50 = dma.hbm_to_vmem [thread:$0]  %s3, 1024, %s45, [#allocation6], 64, 64, 4
    $region17: #{tpu_custom_call.1} parent=1 // pred_fallthru
      _
    // Predicated region
    $region18: #{tpu_custom_call.1} parent=1 // pred_check
      _
    $region19: #{tpu_custom_call.1} parent=1 // pred_check_branch
      %52 = sbr.rel (0) target = $region21
    $region20: #{tpu_custom_call.1} parent=1 // pred_region
      _
    $region21: #{tpu_custom_call.1} parent=1 // pred_fallthru
      _
    // Predicated region
    $region22: #{tpu_custom_call.1} parent=1 // pred_check
      _
    $region23: #{tpu_custom_call.1} parent=1 // pred_check_branch
      %54 = sbr.rel (0) target = $region25
    $region24: #{tpu_custom_call.1} parent=1 // pred_region
      %55 = dma.done [#allocation3], 1024
    $region25: #{tpu_custom_call.1} parent=1 // pred_fallthru
      _
    // Predicated region
    $region26: #{tpu_custom_call.1} parent=1 // pred_check
      _
    $region27: #{tpu_custom_call.1} parent=1 // pred_check_branch
      %57 = sbr.rel (0) target = $region29
    $region28: #{tpu_custom_call.1} parent=1 // pred_region
      %58 = dma.done [#allocation6], 3200
    $region29: #{tpu_custom_call.1} parent=1 // pred_fallthru
      _
    // Predicated region
    $region30: #{tpu_custom_call.1} parent=1 // pred_check
      _
    $region31: #{tpu_custom_call.1} parent=1 // pred_check_branch
      %60 = sbr.rel (0) target = $region33
    $region32: #{tpu_custom_call.1} parent=1 // pred_region
      %61 = dma.done [#allocation6], 1024
    $region33: #{tpu_custom_call.1} parent=1 // pred_fallthru
      _
    %v63 = vld [vmem:[#allocation2] sm:$0xff]
    %v64 = vld [vmem:[#allocation2 + $0x8] sm:$0xff]
    %v65 = vld [vmem:[#allocation2 + $0x10] sm:$0xff]
    %v66 = vld [vmem:[#allocation2 + $0x18] sm:$0xff]
    %v67 = vld [vmem:[#allocation2 + $0x20] sm:$0xff]
    %v68 = vld [vmem:[#allocation2 + $0x28] sm:$0xff]
    %v69 = vld [vmem:[#allocation2 + $0x30] sm:$0xff]
    %v70 = vld [vmem:[#allocation2 + $0x38] sm:$0xff]
    %v71 = vpack.c.bf16 %v67, %v63
    %v72 = vpack.c.bf16 %v68, %v64
    %v73 = vpack.c.bf16 %v69, %v65
    %v74 = vpack.c.bf16 %v70, %v66
    %v75 = vld [vmem:[#allocation5] sm:$0xf]
    %v76 = vld [vmem:[#allocation5 + $0x4] sm:$0xf]
    %v77 = vld [vmem:[#allocation5 + $0x8] sm:$0xf]
    %v78 = vld [vmem:[#allocation5 + $0xc] sm:$0xf]
    %v79 = vld [vmem:[#allocation5 + $0x10] sm:$0xf]
    %v80 = vld [vmem:[#allocation5 + $0x14] sm:$0xf]
    %v81 = vld [vmem:[#allocation5 + $0x18] sm:$0xf]
    %v82 = vld [vmem:[#allocation5 + $0x1c] sm:$0xf]
    %v83 = vld [vmem:[#allocation5 + $0x20] sm:$0xf]
    %v84 = vld [vmem:[#allocation5 + $0x24] sm:$0xf]
    %v85 = vld [vmem:[#allocation5 + $0x28] sm:$0xf]
    %v86 = vld [vmem:[#allocation5 + $0x2c] sm:$0xf]
    %v87 = vld [vmem:[#allocation5 + $0x30] sm:$0xf]
    %v88 = vld [vmem:[#allocation5 + $0x34] sm:$0xf]
    %v89 = vld [vmem:[#allocation5 + $0x38] sm:$0xf]
    %v90 = vld [vmem:[#allocation5 + $0x3c] sm:$0xf]
    %v91 = vld [vmem:[#allocation5 + $0x40] sm:$0xf]
    %v92 = vld [vmem:[#allocation5 + $0x44] sm:$0xf]
    %v93 = vld [vmem:[#allocation5 + $0x48] sm:$0xf]
    %v94 = vld [vmem:[#allocation5 + $0x4c] sm:$0xf]
    %v95 = vld [vmem:[#allocation5 + $0x50] sm:$0xf]
    %v96 = vld [vmem:[#allocation5 + $0x54] sm:$0xf]
    %v97 = vld [vmem:[#allocation5 + $0x58] sm:$0xf]
    %v98 = vld [vmem:[#allocation5 + $0x5c] sm:$0xf]
    %v99 = vld [vmem:[#allocation5 + $0x60] sm:$0xf]
    %v100 = vld [vmem:[#allocation5 + $0x64] sm:$0xf]
    %v101 = vld [vmem:[#allocation5 + $0x68] sm:$0xf]
    %v102 = vld [vmem:[#allocation5 + $0x6c] sm:$0xf]
    %v103 = vld [vmem:[#allocation5 + $0x70] sm:$0xf]
    %v104 = vld [vmem:[#allocation5 + $0x74] sm:$0xf]
    %v105 = vld [vmem:[#allocation5 + $0x78] sm:$0xf]
    %v106 = vld [vmem:[#allocation5 + $0x7c] sm:$0xf]
    %v107 = vld [vmem:[#allocation5 + $0x80] sm:$0xf]
    %v108 = vld [vmem:[#allocation5 + $0x84] sm:$0xf]
    %v109 = vld [vmem:[#allocation5 + $0x88] sm:$0xf]
    %v110 = vld [vmem:[#allocation5 + $0x8c] sm:$0xf]
    %v111 = vld [vmem:[#allocation5 + $0x90] sm:$0xf]
    %v112 = vld [vmem:[#allocation5 + $0x94] sm:$0xf]
    %v113 = vld [vmem:[#allocation5 + $0x98] sm:$0xf]
    %v114 = vld [vmem:[#allocation5 + $0x9c] sm:$0xf]
    %v115 = vld [vmem:[#allocation5 + $0xa0] sm:$0xf]
    %v116 = vld [vmem:[#allocation5 + $0xa4] sm:$0xf]
    %v117 = vld [vmem:[#allocation5 + $0xa8] sm:$0xf]
    %v118 = vld [vmem:[#allocation5 + $0xac] sm:$0xf]
    %v119 = vld [vmem:[#allocation5 + $0xb0] sm:$0xf]
    %v120 = vld [vmem:[#allocation5 + $0xb4] sm:$0xf]
    %v121 = vld [vmem:[#allocation5 + $0xb8] sm:$0xf]
    %v122 = vld [vmem:[#allocation5 + $0xbc] sm:$0xf]
    %v123 = vld [vmem:[#allocation5 + $0xc0] sm:$0xf]
    %v124 = vld [vmem:[#allocation5 + $0xc4] sm:$0xf]
    %v125 = vld [vmem:[%s2] sm:$0x1]
    %v127 = vlaneseq
    %v128 = vshrl.u32 %v127, 7
    %v129 = vsub.s32 0, %v128
    %v130 = vrot.slane %v125, %v129
    %v182 = vunpack.c.l.b16 %v75
    %v183 = vunpack.c.l.b16 %v76
    %v184 = vunpack.c.l.b16 %v77
    %v185 = vunpack.c.l.b16 %v78
    %v186 = vunpack.c.l.b16 %v79
    %v187 = vunpack.c.l.b16 %v80
    %v188 = vunpack.c.l.b16 %v81
    %v189 = vunpack.c.l.b16 %v82
    %v190 = vunpack.c.l.b16 %v83
    %v191 = vunpack.c.l.b16 %v84
    %v192 = vunpack.c.l.b16 %v85
    %v193 = vunpack.c.l.b16 %v86
    %v194 = vunpack.c.l.b16 %v87
    %v195 = vunpack.c.l.b16 %v88
    %v196 = vunpack.c.l.b16 %v89
    %v197 = vunpack.c.l.b16 %v90
    %v198 = vunpack.c.l.b16 %v91
    %v199 = vunpack.c.l.b16 %v92
    %v200 = vunpack.c.l.b16 %v93
    %v201 = vunpack.c.l.b16 %v94
    %v202 = vunpack.c.l.b16 %v95
    %v203 = vunpack.c.l.b16 %v96
    %v204 = vunpack.c.l.b16 %v97
    %v205 = vunpack.c.l.b16 %v98
    %v206 = vunpack.c.l.b16 %v99
    %v207 = vunpack.c.l.b16 %v100
    %v208 = vunpack.c.l.b16 %v101
    %v209 = vunpack.c.l.b16 %v102
    %v210 = vunpack.c.l.b16 %v103
    %v211 = vunpack.c.l.b16 %v104
    %v212 = vunpack.c.l.b16 %v105
    %v213 = vunpack.c.l.b16 %v106
    %v214 = vunpack.c.l.b16 %v107
    %v215 = vunpack.c.l.b16 %v108
    %v216 = vunpack.c.l.b16 %v109
    %v217 = vunpack.c.l.b16 %v110
    %v218 = vunpack.c.l.b16 %v111
    %v219 = vunpack.c.l.b16 %v112
    %v220 = vunpack.c.l.b16 %v113
    %v221 = vunpack.c.l.b16 %v114
    %v222 = vunpack.c.l.b16 %v115
    %v223 = vunpack.c.l.b16 %v116
    %v224 = vunpack.c.l.b16 %v117
    %v225 = vunpack.c.l.b16 %v118
    %v226 = vunpack.c.l.b16 %v119
    %v227 = vunpack.c.l.b16 %v120
    %v228 = vunpack.c.l.b16 %v121
    %v229 = vunpack.c.l.b16 %v122
    %v230 = vunpack.c.l.b16 %v123
    %v231 = vunpack.c.l.b16 %v124
    %v232 = vpack.c.b16 %v183, %v182
    %v233 = vpack.c.b16 %v185, %v184
    %v234 = vpack.c.b16 %v187, %v186
    %v235 = vpack.c.b16 %v189, %v188
    %v236 = vpack.c.b16 %v191, %v190
    %v237 = vpack.c.b16 %v193, %v192
    %v238 = vpack.c.b16 %v195, %v194
    %v239 = vpack.c.b16 %v197, %v196
    %v240 = vpack.c.b16 %v199, %v198
    %v241 = vpack.c.b16 %v201, %v200
    %v242 = vpack.c.b16 %v203, %v202
    %v243 = vpack.c.b16 %v205, %v204
    %v244 = vpack.c.b16 %v207, %v206
    %v245 = vpack.c.b16 %v209, %v208
    %v246 = vpack.c.b16 %v211, %v210
    %v247 = vpack.c.b16 %v213, %v212
    %v248 = vpack.c.b16 %v215, %v214
    %v249 = vpack.c.b16 %v217, %v216
    %v250 = vpack.c.b16 %v219, %v218
    %v251 = vpack.c.b16 %v221, %v220
    %v252 = vpack.c.b16 %v223, %v222
    %v253 = vpack.c.b16 %v225, %v224
    %v254 = vpack.c.b16 %v227, %v226
    %v255 = vpack.c.b16 %v229, %v228
    %v256 = vpack.c.b16 %v231, %v230
    %vm282 = vcmask 130048
    %v284 = vsel %vm282, %v74, 0
    %286 = vmatprep.subr.bf16.mxu0 0
    %287 = vmatpush1.bf16.msra.mxu0 %v239
    %288 = vmatprep.subr.bf16.mxu0 0
    %289 = vmatpush1.bf16.msra.mxu0 %v238
    %290 = vmatprep.subr.bf16.mxu0 0
    %291 = vmatpush1.bf16.msra.mxu0 %v237
    %292 = vmatprep.subr.bf16.mxu0 0
    %293 = vmatpush1.bf16.msra.mxu0 %v236
    %294 = vmatprep.subr.bf16.mxu0 0
    %295 = vmatpush1.bf16.msra.mxu0 %v235
    %296 = vmatprep.subr.bf16.mxu0 0
    %297 = vmatpush1.bf16.msra.mxu0 %v234
    %298 = vmatprep.subr.bf16.mxu0 0
    %299 = vmatpush1.bf16.msra.mxu0 %v233
    %300 = vmatprep.subr.bf16.mxu0 0
    %301 = vmatpush1.bf16.msra.mxu0 %v232
    %302 = vmatprep.subr.bf16.mxu0 0
    %303 = vmatpush2.bf16.msra.mxu0 %v247
    %304 = vmatprep.subr.bf16.mxu0 0
    %305 = vmatpush2.bf16.msra.mxu0 %v246
    %306 = vmatprep.subr.bf16.mxu0 0
    %307 = vmatpush2.bf16.msra.mxu0 %v245
    %308 = vmatprep.subr.bf16.mxu0 0
    %309 = vmatpush2.bf16.msra.mxu0 %v244
    %310 = vmatprep.subr.bf16.mxu0 0
    %311 = vmatpush2.bf16.msra.mxu0 %v243
    %312 = vmatprep.subr.bf16.mxu0 0
    %313 = vmatpush2.bf16.msra.mxu0 %v242
    %314 = vmatprep.subr.bf16.mxu0 0
    %315 = vmatpush2.bf16.msra.mxu0 %v241
    %316 = vmatprep.subr.bf16.mxu0 0
    %317 = vmatpush2.bf16.msra.mxu0 %v240
    %318 = vmatprep.mubr.bf16.mxu0 %v72
    %319 = vmatmul.mubr.bf16.gmra.mxu0 %v71
    %v320 = vpop.f32.mrf.mxu0
    %v321 = vadd.f32 %v130, %v320
    %v322 = vpop.f32.mrf.mxu0
    %v323 = vpop.f32.mrf.mxu0
    %v324 = vadd.f32 %v130, %v323
    %v325 = vpop.f32.mrf.mxu0
    %326 = vdwg.mxu0
    %327 = vmatprep.subr.bf16.mxu0 0
    %328 = vmatpush1.bf16.msra.mxu0 %v255
    %329 = vmatprep.subr.bf16.mxu0 0
    %330 = vmatpush1.bf16.msra.mxu0 %v254
    %331 = vmatprep.subr.bf16.mxu0 0
    %332 = vmatpush1.bf16.msra.mxu0 %v253
    %333 = vmatprep.subr.bf16.mxu0 0
    %334 = vmatpush1.bf16.msra.mxu0 %v252
    %335 = vmatprep.subr.bf16.mxu0 0
    %336 = vmatpush1.bf16.msra.mxu0 %v251
    %337 = vmatprep.subr.bf16.mxu0 0
    %338 = vmatpush1.bf16.msra.mxu0 %v250
    %339 = vmatprep.subr.bf16.mxu0 0
    %340 = vmatpush1.bf16.msra.mxu0 %v249
    %341 = vmatprep.subr.bf16.mxu0 0
    %342 = vmatpush1.bf16.msra.mxu0 %v248
    %343 = vmatprep.subr.bf16.mxu0 0
    %344 = vmatpush2.bf16.msra.mxu0 0
    %345 = vmatprep.subr.bf16.mxu0 0
    %346 = vmatpush2.bf16.msra.mxu0 0
    %347 = vmatprep.subr.bf16.mxu0 0
    %348 = vmatpush2.bf16.msra.mxu0 0
    %349 = vmatprep.subr.bf16.mxu0 0
    %350 = vmatpush2.bf16.msra.mxu0 0
    %351 = vmatprep.subr.bf16.mxu0 0
    %352 = vmatpush2.bf16.msra.mxu0 0
    %353 = vmatprep.subr.bf16.mxu0 0
    %354 = vmatpush2.bf16.msra.mxu0 0
    %355 = vmatprep.subr.bf16.mxu0 0
    %356 = vmatpush2.bf16.msra.mxu0 0
    %357 = vmatprep.subr.bf16.mxu0 0
    %358 = vmatpush2.bf16.msra.mxu0 %v256
    %359 = vmatprep.mubr.bf16.mxu0 %v284
    %360 = vmatmul.mubr.bf16.gmra.mxu0 %v73
    %v361 = vpop.f32.mrf.mxu0
    %v362 = vadd.f32 %v321, %v361
    %v363 = vpop.f32.mrf.mxu0
    %v364 = vpop.f32.mrf.mxu0
    %v365 = vadd.f32 %v324, %v364
    %v366 = vpop.f32.mrf.mxu0
    %367 = vdwg.mxu0
    %v368 = vsub.f32 0.0, %v362
    %v369 = vsub.f32 0.0, %v365
    %v370 = vmul.f32 %v368, 1.442695
    %v371 = vpow.pop %v370
    %v372 = vmul.f32 %v369, 1.442695
    %v373 = vpow.pop %v372
    %v374 = vadd.f32 %v371, 1.0
    %v375 = vadd.f32 %v373, 1.0
    %v376 = vrcp.pop %v374
    %v377 = vmul.f32 1.0, %v376
    %v378 = vrcp.pop %v375
    %v379 = vmul.f32 1.0, %v378
    %v380 = vpack.c.bf16 %v379, %v377
    %v381 = vld [vmem:[#allocation7] sm:$0xf]
    %v382 = vld [vmem:[#allocation7 + $0x4] sm:$0xf]
    %v383 = vld [vmem:[#allocation7 + $0x8] sm:$0xf]
    %v384 = vld [vmem:[#allocation7 + $0xc] sm:$0xf]
    %v385 = vld [vmem:[#allocation7 + $0x10] sm:$0xf]
    %v386 = vld [vmem:[#allocation7 + $0x14] sm:$0xf]
    %v387 = vld [vmem:[#allocation7 + $0x18] sm:$0xf]
    %v388 = vld [vmem:[#allocation7 + $0x1c] sm:$0xf]
    %v389 = vld [vmem:[#allocation7 + $0x20] sm:$0xf]
    %v390 = vld [vmem:[#allocation7 + $0x24] sm:$0xf]
    %v391 = vld [vmem:[#allocation7 + $0x28] sm:$0xf]
    %v392 = vld [vmem:[#allocation7 + $0x2c] sm:$0xf]
    %v393 = vld [vmem:[#allocation7 + $0x30] sm:$0xf]
    %v394 = vld [vmem:[#allocation7 + $0x34] sm:$0xf]
    %v395 = vld [vmem:[#allocation7 + $0x38] sm:$0xf]
    %v396 = vld [vmem:[#allocation7 + $0x3c] sm:$0xf]
    %v397 = vld [vmem:[%s4] sm:$0x1]
    %v399 = vlaneseq
    %v400 = vshrl.u32 %v399, 7
    %v401 = vsub.s32 0, %v400
    %v402 = vrot.slane %v397, %v401
    %v420 = vunpack.c.l.b16 %v381
    %v421 = vunpack.c.l.b16 %v382
    %v422 = vunpack.c.l.b16 %v383
    %v423 = vunpack.c.l.b16 %v384
    %v424 = vunpack.c.l.b16 %v385
    %v425 = vunpack.c.l.b16 %v386
    %v426 = vunpack.c.l.b16 %v387
    %v427 = vunpack.c.l.b16 %v388
    %v428 = vunpack.c.l.b16 %v389
    %v429 = vunpack.c.l.b16 %v390
    %v430 = vunpack.c.l.b16 %v391
    %v431 = vunpack.c.l.b16 %v392
    %v432 = vunpack.c.l.b16 %v393
    %v433 = vunpack.c.l.b16 %v394
    %v434 = vunpack.c.l.b16 %v395
    %v435 = vunpack.c.l.b16 %v396
    %v436 = vpack.c.b16 %v421, %v420
    %v437 = vpack.c.b16 %v423, %v422
    %v438 = vpack.c.b16 %v425, %v424
    %v439 = vpack.c.b16 %v427, %v426
    %v440 = vpack.c.b16 %v429, %v428
    %v441 = vpack.c.b16 %v431, %v430
    %v442 = vpack.c.b16 %v433, %v432
    %v443 = vpack.c.b16 %v435, %v434
    %452 = vmatprep.subr.bf16.mxu0 0
    %453 = vmatpush1.bf16.msra.mxu0 %v443
    %454 = vmatprep.subr.bf16.mxu0 0
    %455 = vmatpush1.bf16.msra.mxu0 %v442
    %456 = vmatprep.subr.bf16.mxu0 0
    %457 = vmatpush1.bf16.msra.mxu0 %v441
    %458 = vmatprep.subr.bf16.mxu0 0
    %459 = vmatpush1.bf16.msra.mxu0 %v440
    %460 = vmatprep.subr.bf16.mxu0 0
    %461 = vmatpush1.bf16.msra.mxu0 %v439
    %462 = vmatprep.subr.bf16.mxu0 0
    %463 = vmatpush1.bf16.msra.mxu0 %v438
    %464 = vmatprep.subr.bf16.mxu0 0
    %465 = vmatpush1.bf16.msra.mxu0 %v437
    %466 = vmatprep.subr.bf16.mxu0 0
    %467 = vmatpush1.bf16.msra.mxu0 %v436
    %468 = vmatprep.subr.bf16.mxu0 0
    %469 = vmatpush2.bf16.msra.mxu0 0
    %470 = vmatprep.subr.bf16.mxu0 0
    %471 = vmatpush2.bf16.msra.mxu0 0
    %472 = vmatprep.subr.bf16.mxu0 0
    %473 = vmatpush2.bf16.msra.mxu0 0
    %474 = vmatprep.subr.bf16.mxu0 0
    %475 = vmatpush2.bf16.msra.mxu0 0
    %476 = vmatprep.subr.bf16.mxu0 0
    %477 = vmatpush2.bf16.msra.mxu0 0
    %478 = vmatprep.subr.bf16.mxu0 0
    %479 = vmatpush2.bf16.msra.mxu0 0
    %480 = vmatprep.subr.bf16.mxu0 0
    %481 = vmatpush2.bf16.msra.mxu0 0
    %482 = vmatprep.subr.bf16.mxu0 0
    %483 = vmatpush2.bf16.msra.mxu0 0
    %484 = vmatprep.mubr.bf16.mxu0 0
    %485 = vmatmul.mubr.bf16.gmra.mxu0 %v380
    %v486 = vpop.f32.mrf.mxu0
    %v487 = vadd.f32 %v402, %v486
    %v488 = vpop.f32.mrf.mxu0
    %v489 = vpop.f32.mrf.mxu0
    %v490 = vadd.f32 %v402, %v489
    %v491 = vpop.f32.mrf.mxu0
    %492 = vdwg.mxu0
    %v493 = vpack.c.bf16 %v490, %v487
    %v495 = vunpack.c.l.b16 %v493
    %v496 = vunpack.c.h.b16 %v493
    %v497 = vpack.c.b16 %v495, %v495
    %v498 = vpack.c.b16 %v496, %v496
    %501 = vst [vmem:[#allocation8] sm:$0xf] %v497
    %502 = vst [vmem:[#allocation8 + $0x4] sm:$0xf] %v498
    // Predicated region
    $region34: #{tpu_custom_call.1} parent=1 // pred_check
      _
    $region35: #{tpu_custom_call.1} parent=1 // pred_check_branch
      %504 = sbr.rel (0) target = $region37
    $region36: #{tpu_custom_call.1} parent=1 // pred_region
      %s506 = ssub.s32 128, 128
      %507 = vsyncadd [#allocation4], %s506
      %s508 = sshll.u32 [#allocation8], 4
      %s509 = int_to_ptr.vmem [resolvable:$true] %s508
      %514 = dma.vmem_to_hbm [thread:$0]  %s509, 128, %s5, [#allocation4], 64, 64, 4
    $region37: #{tpu_custom_call.1} parent=1 // pred_fallthru
      _
    // Predicated region
    $region38: #{tpu_custom_call.1} parent=1 // pred_check
      _
    $region39: #{tpu_custom_call.1} parent=1 // pred_check_branch
      %516 = sbr.rel (0) target = $region41
    $region40: #{tpu_custom_call.1} parent=1 // pred_region
      %517 = dma.done [#allocation4], 128
    $region41: #{tpu_custom_call.1} parent=1 // pred_fallthru
      _
    %518 = vsyncpa [#allocation3], 1
    %519 = vsyncpa [#allocation6], 1
    %520 = vsyncpa [#allocation4], 1

// kernel: tpu_custom_call.1
$region0: #{tpu_custom_call.1}
  #allocation0 [shape = 'u32[]', space=smem, size = 0x4, offset = 0x4, fixed_abs, tag = 'smem constant byte address 0x4 - core index']
  #allocation1 [shape = 'u32[144,128]{1,0:T(1,128)}', space=vmem, size = 0x12000, scoped, tag = 'internal scratch']
  %s0 = inlined_call_operand.hbm [shape: f32[16,400], index: 0, kind: input, shape index: {}]
  %s1 = inlined_call_operand.hbm [shape: bf16[400,128], index: 1, kind: input, shape index: {}]
  %s2 = inlined_call_operand.vmem [shape: f32[1,128], index: 2, kind: input, shape index: {}]
  %s3 = inlined_call_operand.hbm [shape: bf16[128,128], index: 3, kind: input, shape index: {}]
  %s4 = inlined_call_operand.vmem [shape: f32[1,128], index: 4, kind: input, shape index: {}]
  %s5 = inlined_call_operand.hbm [shape: bf16[16,128], index: 5, kind: output, shape index: {}]
  %s6 = sld [smem:[#allocation0]]
  $region42: #{tpu_custom_call.1} parent=0
    _
  %s8 = ssub.s32 1, %s6
  %s9 = scalar_select 0, %s8, %s6
  $region1: #{tpu_custom_call.1} parent=0
    #allocation2 [shape = 'u8[32768]{0}', space=vmem, size = 0x8000, scoped, tag = 'input window, operand 0, single buffered']
    #allocation3 [shape = 's32[1]{0}', space=sflag, size = 0x4, scoped, tag = 'scoped memory for tpu_custom_call.1']
    #allocation4 [shape = 's32[1]{0}', space=sflag, size = 0x4, scoped, tag = 'scoped memory for tpu_custom_call.1']
    #allocation5 [shape = 'u8[102400]{0}', space=vmem, size = 0x19000, scoped, tag = 'input window, operand 1, single buffered']
    #allocation6 [shape = 's32[1]{0}', space=sflag, size = 0x4, scoped, tag = 'scoped memory for tpu_custom_call.1']
    #allocation7 [shape = 'u8[32768]{0}', space=vmem, size = 0x8000, scoped, tag = 'input window, operand 3, single buffered']
    #allocation8 [shape = 'u8[4096]{0}', space=vmem, size = 0x1000, scoped, tag = 'output window, operand 0, single buffered']
    %10 = vsyncpa [#allocation3], 0
    %11 = vsyncpa [#allocation6], 0
    %12 = vsyncpa [#allocation4], 0
    // Predicated region
    $region2: #{tpu_custom_call.1} parent=1 // pred_check
      _
    $region3: #{tpu_custom_call.1} parent=1 // pred_check_branch
      %14 = sbr.rel (0) target = $region5
    $region4: #{tpu_custom_call.1} parent=1 // pred_region
      %s16 = ssub.s32 1024, 1024
      %17 = vsyncadd [#allocation3], %s16
      %s18 = sshll.u32 [#allocation2], 4
      %s19 = int_to_ptr.vmem [resolvable:$true] %s18
      %24 = dma.hbm_to_vmem [thread:$0]  %s0, 1024, %s19, [#allocation3], 512, 512, 32
    $region5: #{tpu_custom_call.1} parent=1 // pred_fallthru
      _
    // Predicated region
    $region6: #{tpu_custom_call.1} parent=1 // pred_check
      _
    $region7: #{tpu_custom_call.1} parent=1 // pred_check_branch
      %26 = sbr.rel (0) target = $region9
    $region8: #{tpu_custom_call.1} parent=1 // pred_region
      %s28 = ssub.s32 3200, 3200
      %29 = vsyncadd [#allocation6], %s28
      %s30 = sshll.u32 [#allocation5], 4
      %s31 = int_to_ptr.vmem [resolvable:$true] %s30
      %36 = dma.hbm_to_vmem [thread:$0]  %s1, 3200, %s31, [#allocation6], 64, 64, 4
    $region9: #{tpu_custom_call.1} parent=1 // pred_fallthru
      _
    // Predicated region
    $region10: #{tpu_custom_call.1} parent=1 // pred_check
      _
    $region11: #{tpu_custom_call.1} parent=1 // pred_check_branch
      %38 = sbr.rel (0) target = $region13
    $region12: #{tpu_custom_call.1} parent=1 // pred_region
      _
    $region13: #{tpu_custom_call.1} parent=1 // pred_fallthru
      _
    // Predicated region
    $region14: #{tpu_custom_call.1} parent=1 // pred_check
      _
    $region15: #{tpu_custom_call.1} parent=1 // pred_check_branch
      %40 = sbr.rel (0) target = $region17
    $region16: #{tpu_custom_call.1} parent=1 // pred_region
      %s42 = ssub.s32 1024, 1024
      %43 = vsyncadd [#allocation6], %s42
      %s44 = sshll.u32 [#allocation7], 4
      %s45 = int_to_ptr.vmem [resolvable:$true] %s44
      %50 = dma.hbm_to_vmem [thread:$0]  %s3, 1024, %s45, [#allocation6], 64, 64, 4
    $region17: #{tpu_custom_call.1} parent=1 // pred_fallthru
      _
    // Predicated region
    $region18: #{tpu_custom_call.1} parent=1 // pred_check
      _
    $region19: #{tpu_custom_call.1} parent=1 // pred_check_branch
      %52 = sbr.rel (0) target = $region21
    $region20: #{tpu_custom_call.1} parent=1 // pred_region
      _
    $region21: #{tpu_custom_call.1} parent=1 // pred_fallthru
      _
    // Predicated region
    $region22: #{tpu_custom_call.1} parent=1 // pred_check
      _
    $region23: #{tpu_custom_call.1} parent=1 // pred_check_branch
      %54 = sbr.rel (0) target = $region25
    $region24: #{tpu_custom_call.1} parent=1 // pred_region
      %55 = dma.done [#allocation3], 1024
    $region25: #{tpu_custom_call.1} parent=1 // pred_fallthru
      _
    // Predicated region
    $region26: #{tpu_custom_call.1} parent=1 // pred_check
      _
    $region27: #{tpu_custom_call.1} parent=1 // pred_check_branch
      %57 = sbr.rel (0) target = $region29
    $region28: #{tpu_custom_call.1} parent=1 // pred_region
      %58 = dma.done [#allocation6], 3200
    $region29: #{tpu_custom_call.1} parent=1 // pred_fallthru
      _
    // Predicated region
    $region30: #{tpu_custom_call.1} parent=1 // pred_check
      _
    $region31: #{tpu_custom_call.1} parent=1 // pred_check_branch
      %60 = sbr.rel (0) target = $region33
    $region32: #{tpu_custom_call.1} parent=1 // pred_region
      %61 = dma.done [#allocation6], 1024
    $region33: #{tpu_custom_call.1} parent=1 // pred_fallthru
      _
    %v63 = vld [vmem:[#allocation2] sm:$0xff]
    %v64 = vld [vmem:[#allocation2 + $0x8] sm:$0xff]
    %v65 = vld [vmem:[#allocation2 + $0x10] sm:$0xff]
    %v66 = vld [vmem:[#allocation2 + $0x18] sm:$0xff]
    %v67 = vld [vmem:[#allocation2 + $0x20] sm:$0xff]
    %v68 = vld [vmem:[#allocation2 + $0x28] sm:$0xff]
    %v69 = vld [vmem:[#allocation2 + $0x30] sm:$0xff]
    %v70 = vld [vmem:[#allocation2 + $0x38] sm:$0xff]
    %v71 = vpack.c.bf16 %v67, %v63
    %v72 = vpack.c.bf16 %v68, %v64
    %v73 = vpack.c.bf16 %v69, %v65
    %v74 = vpack.c.bf16 %v70, %v66
    %v75 = vld [vmem:[#allocation5] sm:$0xf]
    %v76 = vld [vmem:[#allocation5 + $0x4] sm:$0xf]
    %v77 = vld [vmem:[#allocation5 + $0x8] sm:$0xf]
    %v78 = vld [vmem:[#allocation5 + $0xc] sm:$0xf]
    %v79 = vld [vmem:[#allocation5 + $0x10] sm:$0xf]
    %v80 = vld [vmem:[#allocation5 + $0x14] sm:$0xf]
    %v81 = vld [vmem:[#allocation5 + $0x18] sm:$0xf]
    %v82 = vld [vmem:[#allocation5 + $0x1c] sm:$0xf]
    %v83 = vld [vmem:[#allocation5 + $0x20] sm:$0xf]
    %v84 = vld [vmem:[#allocation5 + $0x24] sm:$0xf]
    %v85 = vld [vmem:[#allocation5 + $0x28] sm:$0xf]
    %v86 = vld [vmem:[#allocation5 + $0x2c] sm:$0xf]
    %v87 = vld [vmem:[#allocation5 + $0x30] sm:$0xf]
    %v88 = vld [vmem:[#allocation5 + $0x34] sm:$0xf]
    %v89 = vld [vmem:[#allocation5 + $0x38] sm:$0xf]
    %v90 = vld [vmem:[#allocation5 + $0x3c] sm:$0xf]
    %v91 = vld [vmem:[#allocation5 + $0x40] sm:$0xf]
    %v92 = vld [vmem:[#allocation5 + $0x44] sm:$0xf]
    %v93 = vld [vmem:[#allocation5 + $0x48] sm:$0xf]
    %v94 = vld [vmem:[#allocation5 + $0x4c] sm:$0xf]
    %v95 = vld [vmem:[#allocation5 + $0x50] sm:$0xf]
    %v96 = vld [vmem:[#allocation5 + $0x54] sm:$0xf]
    %v97 = vld [vmem:[#allocation5 + $0x58] sm:$0xf]
    %v98 = vld [vmem:[#allocation5 + $0x5c] sm:$0xf]
    %v99 = vld [vmem:[#allocation5 + $0x60] sm:$0xf]
    %v100 = vld [vmem:[#allocation5 + $0x64] sm:$0xf]
    %v101 = vld [vmem:[#allocation5 + $0x68] sm:$0xf]
    %v102 = vld [vmem:[#allocation5 + $0x6c] sm:$0xf]
    %v103 = vld [vmem:[#allocation5 + $0x70] sm:$0xf]
    %v104 = vld [vmem:[#allocation5 + $0x74] sm:$0xf]
    %v105 = vld [vmem:[#allocation5 + $0x78] sm:$0xf]
    %v106 = vld [vmem:[#allocation5 + $0x7c] sm:$0xf]
    %v107 = vld [vmem:[#allocation5 + $0x80] sm:$0xf]
    %v108 = vld [vmem:[#allocation5 + $0x84] sm:$0xf]
    %v109 = vld [vmem:[#allocation5 + $0x88] sm:$0xf]
    %v110 = vld [vmem:[#allocation5 + $0x8c] sm:$0xf]
    %v111 = vld [vmem:[#allocation5 + $0x90] sm:$0xf]
    %v112 = vld [vmem:[#allocation5 + $0x94] sm:$0xf]
    %v113 = vld [vmem:[#allocation5 + $0x98] sm:$0xf]
    %v114 = vld [vmem:[#allocation5 + $0x9c] sm:$0xf]
    %v115 = vld [vmem:[#allocation5 + $0xa0] sm:$0xf]
    %v116 = vld [vmem:[#allocation5 + $0xa4] sm:$0xf]
    %v117 = vld [vmem:[#allocation5 + $0xa8] sm:$0xf]
    %v118 = vld [vmem:[#allocation5 + $0xac] sm:$0xf]
    %v119 = vld [vmem:[#allocation5 + $0xb0] sm:$0xf]
    %v120 = vld [vmem:[#allocation5 + $0xb4] sm:$0xf]
    %v121 = vld [vmem:[#allocation5 + $0xb8] sm:$0xf]
    %v122 = vld [vmem:[#allocation5 + $0xbc] sm:$0xf]
    %v123 = vld [vmem:[#allocation5 + $0xc0] sm:$0xf]
    %v124 = vld [vmem:[#allocation5 + $0xc4] sm:$0xf]
    %v125 = vld [vmem:[%s2] sm:$0x1]
    %v127 = vlaneseq
    %v128 = vshrl.u32 %v127, 7
    %v129 = vsub.s32 0, %v128
    %v130 = vrot.slane %v125, %v129
    %v182 = vunpack.c.l.b16 %v75
    %v183 = vunpack.c.l.b16 %v76
    %v184 = vunpack.c.l.b16 %v77
    %v185 = vunpack.c.l.b16 %v78
    %v186 = vunpack.c.l.b16 %v79
    %v187 = vunpack.c.l.b16 %v80
    %v188 = vunpack.c.l.b16 %v81
    %v189 = vunpack.c.l.b16 %v82
    %v190 = vunpack.c.l.b16 %v83
    %v191 = vunpack.c.l.b16 %v84
    %v192 = vunpack.c.l.b16 %v85
    %v193 = vunpack.c.l.b16 %v86
    %v194 = vunpack.c.l.b16 %v87
    %v195 = vunpack.c.l.b16 %v88
    %v196 = vunpack.c.l.b16 %v89
    %v197 = vunpack.c.l.b16 %v90
    %v198 = vunpack.c.l.b16 %v91
    %v199 = vunpack.c.l.b16 %v92
    %v200 = vunpack.c.l.b16 %v93
    %v201 = vunpack.c.l.b16 %v94
    %v202 = vunpack.c.l.b16 %v95
    %v203 = vunpack.c.l.b16 %v96
    %v204 = vunpack.c.l.b16 %v97
    %v205 = vunpack.c.l.b16 %v98
    %v206 = vunpack.c.l.b16 %v99
    %v207 = vunpack.c.l.b16 %v100
    %v208 = vunpack.c.l.b16 %v101
    %v209 = vunpack.c.l.b16 %v102
    %v210 = vunpack.c.l.b16 %v103
    %v211 = vunpack.c.l.b16 %v104
    %v212 = vunpack.c.l.b16 %v105
    %v213 = vunpack.c.l.b16 %v106
    %v214 = vunpack.c.l.b16 %v107
    %v215 = vunpack.c.l.b16 %v108
    %v216 = vunpack.c.l.b16 %v109
    %v217 = vunpack.c.l.b16 %v110
    %v218 = vunpack.c.l.b16 %v111
    %v219 = vunpack.c.l.b16 %v112
    %v220 = vunpack.c.l.b16 %v113
    %v221 = vunpack.c.l.b16 %v114
    %v222 = vunpack.c.l.b16 %v115
    %v223 = vunpack.c.l.b16 %v116
    %v224 = vunpack.c.l.b16 %v117
    %v225 = vunpack.c.l.b16 %v118
    %v226 = vunpack.c.l.b16 %v119
    %v227 = vunpack.c.l.b16 %v120
    %v228 = vunpack.c.l.b16 %v121
    %v229 = vunpack.c.l.b16 %v122
    %v230 = vunpack.c.l.b16 %v123
    %v231 = vunpack.c.l.b16 %v124
    %v232 = vpack.c.b16 %v183, %v182
    %v233 = vpack.c.b16 %v185, %v184
    %v234 = vpack.c.b16 %v187, %v186
    %v235 = vpack.c.b16 %v189, %v188
    %v236 = vpack.c.b16 %v191, %v190
    %v237 = vpack.c.b16 %v193, %v192
    %v238 = vpack.c.b16 %v195, %v194
    %v239 = vpack.c.b16 %v197, %v196
    %v240 = vpack.c.b16 %v199, %v198
    %v241 = vpack.c.b16 %v201, %v200
    %v242 = vpack.c.b16 %v203, %v202
    %v243 = vpack.c.b16 %v205, %v204
    %v244 = vpack.c.b16 %v207, %v206
    %v245 = vpack.c.b16 %v209, %v208
    %v246 = vpack.c.b16 %v211, %v210
    %v247 = vpack.c.b16 %v213, %v212
    %v248 = vpack.c.b16 %v215, %v214
    %v249 = vpack.c.b16 %v217, %v216
    %v250 = vpack.c.b16 %v219, %v218
    %v251 = vpack.c.b16 %v221, %v220
    %v252 = vpack.c.b16 %v223, %v222
    %v253 = vpack.c.b16 %v225, %v224
    %v254 = vpack.c.b16 %v227, %v226
    %v255 = vpack.c.b16 %v229, %v228
    %v256 = vpack.c.b16 %v231, %v230
    %vm282 = vcmask 130048
    %v284 = vsel %vm282, %v74, 0
    %286 = vmatprep.subr.bf16.mxu0 0
    %287 = vmatpush1.bf16.msra.mxu0 %v239
    %288 = vmatprep.subr.bf16.mxu0 0
    %289 = vmatpush1.bf16.msra.mxu0 %v238
    %290 = vmatprep.subr.bf16.mxu0 0
    %291 = vmatpush1.bf16.msra.mxu0 %v237
    %292 = vmatprep.subr.bf16.mxu0 0
    %293 = vmatpush1.bf16.msra.mxu0 %v236
    %294 = vmatprep.subr.bf16.mxu0 0
    %295 = vmatpush1.bf16.msra.mxu0 %v235
    %296 = vmatprep.subr.bf16.mxu0 0
    %297 = vmatpush1.bf16.msra.mxu0 %v234
    %298 = vmatprep.subr.bf16.mxu0 0
    %299 = vmatpush1.bf16.msra.mxu0 %v233
    %300 = vmatprep.subr.bf16.mxu0 0
    %301 = vmatpush1.bf16.msra.mxu0 %v232
    %302 = vmatprep.subr.bf16.mxu0 0
    %303 = vmatpush2.bf16.msra.mxu0 %v247
    %304 = vmatprep.subr.bf16.mxu0 0
    %305 = vmatpush2.bf16.msra.mxu0 %v246
    %306 = vmatprep.subr.bf16.mxu0 0
    %307 = vmatpush2.bf16.msra.mxu0 %v245
    %308 = vmatprep.subr.bf16.mxu0 0
    %309 = vmatpush2.bf16.msra.mxu0 %v244
    %310 = vmatprep.subr.bf16.mxu0 0
    %311 = vmatpush2.bf16.msra.mxu0 %v243
    %312 = vmatprep.subr.bf16.mxu0 0
    %313 = vmatpush2.bf16.msra.mxu0 %v242
    %314 = vmatprep.subr.bf16.mxu0 0
    %315 = vmatpush2.bf16.msra.mxu0 %v241
    %316 = vmatprep.subr.bf16.mxu0 0
    %317 = vmatpush2.bf16.msra.mxu0 %v240
    %318 = vmatprep.mubr.bf16.mxu0 %v72
    %319 = vmatmul.mubr.bf16.gmra.mxu0 %v71
    %v320 = vpop.f32.mrf.mxu0
    %v321 = vadd.f32 %v130, %v320
    %v322 = vpop.f32.mrf.mxu0
    %v323 = vpop.f32.mrf.mxu0
    %v324 = vadd.f32 %v130, %v323
    %v325 = vpop.f32.mrf.mxu0
    %326 = vdwg.mxu0
    %327 = vmatprep.subr.bf16.mxu0 0
    %328 = vmatpush1.bf16.msra.mxu0 %v255
    %329 = vmatprep.subr.bf16.mxu0 0
    %330 = vmatpush1.bf16.msra.mxu0 %v254
    %331 = vmatprep.subr.bf16.mxu0 0
    %332 = vmatpush1.bf16.msra.mxu0 %v253
    %333 = vmatprep.subr.bf16.mxu0 0
    %334 = vmatpush1.bf16.msra.mxu0 %v252
    %335 = vmatprep.subr.bf16.mxu0 0
    %336 = vmatpush1.bf16.msra.mxu0 %v251
    %337 = vmatprep.subr.bf16.mxu0 0
    %338 = vmatpush1.bf16.msra.mxu0 %v250
    %339 = vmatprep.subr.bf16.mxu0 0
    %340 = vmatpush1.bf16.msra.mxu0 %v249
    %341 = vmatprep.subr.bf16.mxu0 0
    %342 = vmatpush1.bf16.msra.mxu0 %v248
    %343 = vmatprep.subr.bf16.mxu0 0
    %344 = vmatpush2.bf16.msra.mxu0 0
    %345 = vmatprep.subr.bf16.mxu0 0
    %346 = vmatpush2.bf16.msra.mxu0 0
    %347 = vmatprep.subr.bf16.mxu0 0
    %348 = vmatpush2.bf16.msra.mxu0 0
    %349 = vmatprep.subr.bf16.mxu0 0
    %350 = vmatpush2.bf16.msra.mxu0 0
    %351 = vmatprep.subr.bf16.mxu0 0
    %352 = vmatpush2.bf16.msra.mxu0 0
    %353 = vmatprep.subr.bf16.mxu0 0
    %354 = vmatpush2.bf16.msra.mxu0 0
    %355 = vmatprep.subr.bf16.mxu0 0
    %356 = vmatpush2.bf16.msra.mxu0 0
    %357 = vmatprep.subr.bf16.mxu0 0
    %358 = vmatpush2.bf16.msra.mxu0 %v256
    %359 = vmatprep.mubr.bf16.mxu0 %v284
    %360 = vmatmul.mubr.bf16.gmra.mxu0 %v73
    %v361 = vpop.f32.mrf.mxu0
    %v362 = vadd.f32 %v321, %v361
    %v363 = vpop.f32.mrf.mxu0
    %v364 = vpop.f32.mrf.mxu0
    %v365 = vadd.f32 %v324, %v364
    %v366 = vpop.f32.mrf.mxu0
    %367 = vdwg.mxu0
    %v368 = vsub.f32 0.0, %v362
    %v369 = vsub.f32 0.0, %v365
    %v370 = vmul.f32 %v368, 1.442695
    %v371 = vpow.pop %v370
    %v372 = vmul.f32 %v369, 1.442695
    %v373 = vpow.pop %v372
    %v374 = vadd.f32 %v371, 1.0
    %v375 = vadd.f32 %v373, 1.0
    %v376 = vrcp.pop %v374
    %v377 = vmul.f32 1.0, %v376
    %v378 = vrcp.pop %v375
    %v379 = vmul.f32 1.0, %v378
    %v380 = vpack.c.bf16 %v379, %v377
    %v381 = vld [vmem:[#allocation7] sm:$0xf]
    %v382 = vld [vmem:[#allocation7 + $0x4] sm:$0xf]
    %v383 = vld [vmem:[#allocation7 + $0x8] sm:$0xf]
    %v384 = vld [vmem:[#allocation7 + $0xc] sm:$0xf]
    %v385 = vld [vmem:[#allocation7 + $0x10] sm:$0xf]
    %v386 = vld [vmem:[#allocation7 + $0x14] sm:$0xf]
    %v387 = vld [vmem:[#allocation7 + $0x18] sm:$0xf]
    %v388 = vld [vmem:[#allocation7 + $0x1c] sm:$0xf]
    %v389 = vld [vmem:[#allocation7 + $0x20] sm:$0xf]
    %v390 = vld [vmem:[#allocation7 + $0x24] sm:$0xf]
    %v391 = vld [vmem:[#allocation7 + $0x28] sm:$0xf]
    %v392 = vld [vmem:[#allocation7 + $0x2c] sm:$0xf]
    %v393 = vld [vmem:[#allocation7 + $0x30] sm:$0xf]
    %v394 = vld [vmem:[#allocation7 + $0x34] sm:$0xf]
    %v395 = vld [vmem:[#allocation7 + $0x38] sm:$0xf]
    %v396 = vld [vmem:[#allocation7 + $0x3c] sm:$0xf]
    %v397 = vld [vmem:[%s4] sm:$0x1]
    %v399 = vlaneseq
    %v400 = vshrl.u32 %v399, 7
    %v401 = vsub.s32 0, %v400
    %v402 = vrot.slane %v397, %v401
    %v420 = vunpack.c.l.b16 %v381
    %v421 = vunpack.c.l.b16 %v382
    %v422 = vunpack.c.l.b16 %v383
    %v423 = vunpack.c.l.b16 %v384
    %v424 = vunpack.c.l.b16 %v385
    %v425 = vunpack.c.l.b16 %v386
    %v426 = vunpack.c.l.b16 %v387
    %v427 = vunpack.c.l.b16 %v388
    %v428 = vunpack.c.l.b16 %v389
    %v429 = vunpack.c.l.b16 %v390
    %v430 = vunpack.c.l.b16 %v391
    %v431 = vunpack.c.l.b16 %v392
    %v432 = vunpack.c.l.b16 %v393
    %v433 = vunpack.c.l.b16 %v394
    %v434 = vunpack.c.l.b16 %v395
    %v435 = vunpack.c.l.b16 %v396
    %v436 = vpack.c.b16 %v421, %v420
    %v437 = vpack.c.b16 %v423, %v422
    %v438 = vpack.c.b16 %v425, %v424
    %v439 = vpack.c.b16 %v427, %v426
    %v440 = vpack.c.b16 %v429, %v428
    %v441 = vpack.c.b16 %v431, %v430
    %v442 = vpack.c.b16 %v433, %v432
    %v443 = vpack.c.b16 %v435, %v434
    %452 = vmatprep.subr.bf16.mxu0 0
    %453 = vmatpush1.bf16.msra.mxu0 %v443
    %454 = vmatprep.subr.bf16.mxu0 0
    %455 = vmatpush1.bf16.msra.mxu0 %v442
    %456 = vmatprep.subr.bf16.mxu0 0
    %457 = vmatpush1.bf16.msra.mxu0 %v441
    %458 = vmatprep.subr.bf16.mxu0 0
    %459 = vmatpush1.bf16.msra.mxu0 %v440
    %460 = vmatprep.subr.bf16.mxu0 0
    %461 = vmatpush1.bf16.msra.mxu0 %v439
    %462 = vmatprep.subr.bf16.mxu0 0
    %463 = vmatpush1.bf16.msra.mxu0 %v438
    %464 = vmatprep.subr.bf16.mxu0 0
    %465 = vmatpush1.bf16.msra.mxu0 %v437
    %466 = vmatprep.subr.bf16.mxu0 0
    %467 = vmatpush1.bf16.msra.mxu0 %v436
    %468 = vmatprep.subr.bf16.mxu0 0
    %469 = vmatpush2.bf16.msra.mxu0 0
    %470 = vmatprep.subr.bf16.mxu0 0
    %471 = vmatpush2.bf16.msra.mxu0 0
    %472 = vmatprep.subr.bf16.mxu0 0
    %473 = vmatpush2.bf16.msra.mxu0 0
    %474 = vmatprep.subr.bf16.mxu0 0
    %475 = vmatpush2.bf16.msra.mxu0 0
    %476 = vmatprep.subr.bf16.mxu0 0
    %477 = vmatpush2.bf16.msra.mxu0 0
    %478 = vmatprep.subr.bf16.mxu0 0
    %479 = vmatpush2.bf16.msra.mxu0 0
    %480 = vmatprep.subr.bf16.mxu0 0
    %481 = vmatpush2.bf16.msra.mxu0 0
    %482 = vmatprep.subr.bf16.mxu0 0
    %483 = vmatpush2.bf16.msra.mxu0 0
    %484 = vmatprep.mubr.bf16.mxu0 0
    %485 = vmatmul.mubr.bf16.gmra.mxu0 %v380
    %v486 = vpop.f32.mrf.mxu0
    %v487 = vadd.f32 %v402, %v486
    %v488 = vpop.f32.mrf.mxu0
    %v489 = vpop.f32.mrf.mxu0
    %v490 = vadd.f32 %v402, %v489
    %v491 = vpop.f32.mrf.mxu0
    %492 = vdwg.mxu0
    %v493 = vpack.c.bf16 %v490, %v487
    %v495 = vunpack.c.l.b16 %v493
    %v496 = vunpack.c.h.b16 %v493
    %v497 = vpack.c.b16 %v495, %v495
    %v498 = vpack.c.b16 %v496, %v496
    %501 = vst [vmem:[#allocation8] sm:$0xf] %v497
    %502 = vst [vmem:[#allocation8 + $0x4] sm:$0xf] %v498
    // Predicated region
    $region34: #{tpu_custom_call.1} parent=1 // pred_check
      _
    $region35: #{tpu_custom_call.1} parent=1 // pred_check_branch
      %504 = sbr.rel (0) target = $region37
    $region36: #{tpu_custom_call.1} parent=1 // pred_region
      %s506 = ssub.s32 128, 128
      %507 = vsyncadd [#allocation4], %s506
      %s508 = sshll.u32 [#allocation8], 4
      %s509 = int_to_ptr.vmem [resolvable:$true] %s508
      %514 = dma.vmem_to_hbm [thread:$0]  %s509, 128, %s5, [#allocation4], 64, 64, 4
    $region37: #{tpu_custom_call.1} parent=1 // pred_fallthru
      _
    // Predicated region
    $region38: #{tpu_custom_call.1} parent=1 // pred_check
      _
    $region39: #{tpu_custom_call.1} parent=1 // pred_check_branch
      %516 = sbr.rel (0) target = $region41
    $region40: #{tpu_custom_call.1} parent=1 // pred_region
      %517 = dma.done [#allocation4], 128
    $region41: #{tpu_custom_call.1} parent=1 // pred_fallthru
      _
    %518 = vsyncpa [#allocation3], 1
    %519 = vsyncpa [#allocation6], 1
    %520 = vsyncpa [#allocation4], 1

</llo_original>
